<compile_context>
chip_gen: v5e
topology: v5e:2x2
jax: 0.10.0
libtpu: 0.0.40
codegen_flags: <defaults>
</compile_context>

<pallas_src>
import functools
import math

import jax
import jax.numpy as jnp
from jax import lax
from jax.experimental import pallas as pl
from jax.experimental.pallas import tpu as pltpu

EPS = 1e-5
_FUSED_MAX_BYTES = 6 * 1024 * 1024     # single fused call when the slab fits in VMEM
_TILE_BYTES = 4 * 1024 * 1024          # per-tile f32 footprint for the two-phase path
_VMEM_LIMIT = 32 * 1024 * 1024         # safe on v5e/v6e (128 MiB) and v7x (64 MiB)
_FUSED_CHUNK = 256                     # rows per in-kernel chunk in the fused path
_MAX_PACKED_LANES = 512                # cap on the lane-packed width L


def _cdiv(a, b):
    return -(-a // b)


def _round_up(v, m):
    return ((v + m - 1) // m) * m


def _row_align(dtype):
    # sublane packing: f32 -> 8 rows, bf16 -> 16, int8/fp8 -> 32
    return 8 * max(1, 4 // jnp.dtype(dtype).itemsize)


def _fold_groups(v, F, L):
    """Circular tree all-reduce across the `groups = L // F` band copies (XLU rolls).

    groups is always a power of two (L = F * 128/gcd(F,128)), so after
    log2(groups) roll-by-k*F-and-add steps every lane holds its band's total.
    """
    shift = F
    while shift < L:
        v = v + pltpu.roll(v, shift, axis=1)
        shift *= 2
    return v


# --------------------------------------------------------------------------
# Fused single-call path (slab resident in VMEM).
# --------------------------------------------------------------------------
def _fused_kernel(x_ref, g_ref, bt_ref, o_ref, *, R, L, F, count, eps, chunk):
    n_full = R // chunk
    rem = R - n_full * chunk

    # ---- stats: chunked loop over the VMEM-resident slab -------------------
    def _stats_step(j, carry):
        s, q = carry
        off = pl.multiple_of(j * chunk, chunk)
        xc = x_ref[pl.ds(off, chunk), :].astype(jnp.float32)
        xc3 = xc.reshape(chunk // 8, 8, L)          # per-sublane partial accumulators
        s = s + jnp.sum(xc3, axis=0)
        q = q + jnp.sum(xc3 * xc3, axis=0)
        return s, q

    init = (jnp.zeros((8, L), jnp.float32), jnp.zeros((8, L), jnp.float32))
    if n_full > 0:
        s8, q8 = lax.fori_loop(0, n_full, _stats_step, init)
    else:
        s8, q8 = init
    s = jnp.sum(s8, axis=0, keepdims=True)          # (1, L)
    q = jnp.sum(q8, axis=0, keepdims=True)
    if rem > 0:                                     # static tail slice
        xt = x_ref[pl.ds(n_full * chunk, rem), :].astype(jnp.float32)
        s = s + jnp.sum(xt, axis=0, keepdims=True)
        q = q + jnp.sum(xt * xt, axis=0, keepdims=True)

    # ---- fold: per-band stats and pre-folded affine (a, b) -----------------
    s = _fold_groups(s, F, L)
    q = _fold_groups(q, F, L)
    inv_n = jnp.float32(1.0 / count)
    mean = s * inv_n
    var = jnp.maximum(q * inv_n - mean * mean, 0.0)          # biased variance
    a = g_ref[...] * lax.rsqrt(var + jnp.float32(eps))       # (1, L)
    b = bt_ref[...] - mean * a

    # ---- normalize: single fused FMA per element ---------------------------
    def _norm_step(j, carry):
        off = pl.multiple_of(j * chunk, chunk)
        xc = x_ref[pl.ds(off, chunk), :].astype(jnp.float32)
        o_ref[pl.ds(off, chunk), :] = (xc * a + b).astype(o_ref.dtype)
        return carry

    if n_full > 0:
        lax.fori_loop(0, n_full, _norm_step, 0)
    if rem > 0:
        xt = x_ref[pl.ds(n_full * chunk, rem), :].astype(jnp.float32)
        o_ref[pl.ds(n_full * chunk, rem), :] = (xt * a + b).astype(o_ref.dtype)


# --------------------------------------------------------------------------
# Two-phase path for large slabs.
# --------------------------------------------------------------------------
def _stats_kernel(x_ref, sum_ref, sq_ref, *, tile_r, total_rows, n_inner, need_mask):
    """Per-core (leading 'parallel' axis) per-sublane sum / sum-of-squares."""
    i = pl.program_id(1)

    @pl.when(i == 0)
    def _():
        sum_ref[...] = jnp.zeros_like(sum_ref)
        sq_ref[...] = jnp.zeros_like(sq_ref)

    x = x_ref[...].astype(jnp.float32)                       # (tile_r, L)
    if need_mask:                                            # ragged / duplicated tiles
        c = pl.program_id(0)
        row0 = (c * n_inner + i) * tile_r
        rows = lax.broadcasted_iota(jnp.int32, x.shape, 0) + row0
        x = jnp.where(rows < total_rows, x, 0.0)
    x3 = x.reshape(tile_r // 8, 8, x.shape[1])
    sum_ref[...] += jnp.sum(x3, axis=0, keepdims=True)       # (1, 8, L)
    sq_ref[...] += jnp.sum(x3 * x3, axis=0, keepdims=True)


def _norm_kernel(sum_ref, sq_ref, g_ref, bt_ref, x_ref, o_ref, *, F, L, count, eps):
    """Fold the tiny (2, 8, L) stats in-kernel (XLU/EUP slots) and normalize."""
    s8 = sum_ref[0] + sum_ref[1]                             # combine the 2 cores
    q8 = sq_ref[0] + sq_ref[1]
    s = _fold_groups(jnp.sum(s8, axis=0, keepdims=True), F, L)
    q = _fold_groups(jnp.sum(q8, axis=0, keepdims=True), F, L)
    inv_n = jnp.float32(1.0 / count)
    mean = s * inv_n
    var = jnp.maximum(q * inv_n - mean * mean, 0.0)
    a = g_ref[...] * lax.rsqrt(var + jnp.float32(eps))
    b = bt_ref[...] - mean * a
    x = x_ref[...].astype(jnp.float32)
    o_ref[...] = (x * a + b).astype(o_ref.dtype)


def _two_phase(x2d, gamma_row, beta_row, F, count, eps):
    R, L = x2d.shape
    itemsize = x2d.dtype.itemsize
    align = _row_align(x2d.dtype)
    tile_r = max(align, (_TILE_BYTES // (L * 4)) // align * align)
    tile_r = min(tile_r, _round_up(R, align))
    n_tiles = _cdiv(R, tile_r)
    n_inner = _cdiv(n_tiles, 2)                  # tiles per core (leading axis = 2)
    need_mask = (2 * n_inner * tile_r) != R

    def x_map(c, i):
        # clamp: the duplicated / out-of-range steps re-read the last valid
        # block and are fully masked to zero inside the kernel.
        return (jnp.minimum(c * n_inner + i, n_tiles - 1), 0)

    lane_sum, lane_sq = pl.pallas_call(
        functools.partial(_stats_kernel, tile_r=tile_r, total_rows=R,
                          n_inner=n_inner, need_mask=need_mask),
        out_shape=(jax.ShapeDtypeStruct((2, 8, L), jnp.float32),
                   jax.ShapeDtypeStruct((2, 8, L), jnp.float32)),
        grid_spec=pltpu.PrefetchScalarGridSpec(
            num_scalar_prefetch=0,
            grid=(2, n_inner),
            in_specs=[pl.BlockSpec((tile_r, L), x_map)],
            out_specs=[pl.BlockSpec((1, 8, L), lambda c, i: (c, 0, 0)),
                       pl.BlockSpec((1, 8, L), lambda c, i: (c, 0, 0))],
        ),
        compiler_params=pltpu.CompilerParams(
            dimension_semantics=("parallel", "arbitrary"),
            vmem_limit_bytes=_VMEM_LIMIT),
        cost_estimate=pl.CostEstimate(
            flops=3 * R * L, transcendentals=0,
            bytes_accessed=R * L * itemsize + 4 * 8 * L * 4),
    )(x2d)

    out2d = pl.pallas_call(
        functools.partial(_norm_kernel, F=F, L=L, count=count, eps=eps),
        out_shape=jax.ShapeDtypeStruct((R, L), x2d.dtype),
        grid_spec=pltpu.PrefetchScalarGridSpec(
            num_scalar_prefetch=0,
            grid=(n_tiles,),
            in_specs=[pl.BlockSpec((2, 8, L), lambda i: (0, 0, 0)),   # sum
                      pl.BlockSpec((2, 8, L), lambda i: (0, 0, 0)),   # sumsq
                      pl.BlockSpec((1, L), lambda i: (0, 0)),         # gamma (packed)
                      pl.BlockSpec((1, L), lambda i: (0, 0)),         # beta  (packed)
                      pl.BlockSpec((tile_r, L), lambda i: (i, 0))],   # x tile
            out_specs=pl.BlockSpec((tile_r, L), lambda i: (i, 0)),
        ),
        compiler_params=pltpu.CompilerParams(
            dimension_semantics=("parallel",),
            vmem_limit_bytes=_VMEM_LIMIT),
        cost_estimate=pl.CostEstimate(
            flops=2 * R * L, transcendentals=L,
            bytes_accessed=2 * R * L * itemsize),
    )(lane_sum, lane_sq, gamma_row, beta_row, x2d)
    return out2d


# --------------------------------------------------------------------------
# Public wrapper.
# --------------------------------------------------------------------------
def temporal_batch_norm(x, gamma, beta, *, eps=EPS, fused_max_bytes=_FUSED_MAX_BYTES):
    """x: (..., F) with F == num_bands; gamma, beta: (F,). Training-mode BN stats."""
    orig_shape = x.shape
    F = int(orig_shape[-1])
    total = int(x.size)
    count = total // F                          # samples per band (everything but bands)

    # Lane packing: smallest L that is a multiple of both F and 128 (row-major
    # reshape is free; band of lane l is l % F).  Fallback L = F (masked stores)
    # only when no lane-dense packing exists.
    lcm = F * (128 // math.gcd(F, 128))
    if lcm <= _MAX_PACKED_LANES and total % lcm == 0:
        L = lcm
    else:
        L = F
    groups = L // F
    R = total // L
    x2d = x.reshape(R, L)

    gamma_row = jnp.tile(gamma.reshape(F).astype(jnp.float32), groups).reshape(1, L)
    beta_row = jnp.tile(beta.reshape(F).astype(jnp.float32), groups).reshape(1, L)

    slab_bytes = total * x.dtype.itemsize
    if slab_bytes <= fused_max_bytes:
        # Single fused call: x and out resident in VMEM, 2 HBM passes total.
        out2d = pl.pallas_call(
            functools.partial(_fused_kernel, R=R, L=L, F=F, count=count,
                              eps=eps, chunk=_FUSED_CHUNK),
            out_shape=jax.ShapeDtypeStruct((R, L), x.dtype),
            grid=(1,),
            in_specs=[pl.BlockSpec((R, L), lambda i: (0, 0)),
                      pl.BlockSpec((1, L), lambda i: (0, 0)),
                      pl.BlockSpec((1, L), lambda i: (0, 0))],
            out_specs=pl.BlockSpec((R, L), lambda i: (0, 0)),
            compiler_params=pltpu.CompilerParams(vmem_limit_bytes=_VMEM_LIMIT),
            cost_estimate=pl.CostEstimate(flops=5 * total, transcendentals=L,
                                          bytes_accessed=2 * slab_bytes),
        )(x2d, gamma_row, beta_row)
    else:
        out2d = _two_phase(x2d, gamma_row, beta_row, F, count, eps)

    return out2d.reshape(orig_shape)


def _reference(x, gamma, beta):
    # Pure-JAX reference of the PyTorch forward (training-mode batch statistics).
    F = x.shape[-1]
    x2d = x.reshape(-1, F).astype(jnp.float32)
    mean = jnp.mean(x2d, axis=0, keepdims=True)
    var = jnp.mean((x2d - mean) ** 2, axis=0, keepdims=True)
    y = (x2d - mean) / jnp.sqrt(var + EPS)
    y = y * gamma.reshape(1, F) + beta.reshape(1, F)
    return y.reshape(x.shape).astype(x.dtype)


if __name__ == "__main__":
    key = jax.random.PRNGKey(0)
    kx, kg, kb, kx2 = jax.random.split(key, 4)

    # Primary demo: (batch, channels, time, bands) with bands = num_bands = 16.
    B, C, T, num_bands = 2, 4, 16, 16
    x = jax.random.normal(kx, (B, C, T, num_bands), dtype=jnp.float32) * 2.0 + 0.5
    gamma = 1.0 + 0.1 * jax.random.normal(kg, (num_bands,), dtype=jnp.float32)
    beta = 0.1 * jax.random.normal(kb, (num_bands,), dtype=jnp.float32)

    out = jax.block_until_ready(temporal_batch_norm(x, gamma, beta))
    ref = _reference(x, gamma, beta)
    assert out.shape == x.shape and out.dtype == x.dtype
    assert jnp.allclose(out, ref, atol=1e-4, rtol=1e-4), "fused path mismatch"

    # Secondary check: force the two-phase path (2-core stats + in-kernel fold).
    F2 = 32
    x2 = jax.random.normal(kx2, (2, 4, 64, F2), dtype=jnp.float32) - 1.5
    g2 = jnp.linspace(0.5, 1.5, F2, dtype=jnp.float32)
    b2 = jnp.linspace(-0.2, 0.2, F2, dtype=jnp.float32)
    out2 = jax.block_until_ready(
        temporal_batch_norm(x2, g2, b2, fused_max_bytes=0))
    ref2 = _reference(x2, g2, b2)
    assert jnp.allclose(out2, ref2, atol=1e-4, rtol=1e-4), "two-phase path mismatch"

    print("KERNEL_OK")
</pallas_src>

<mosaic_0001>
module attributes {stable_mosaic.version = 11 : i64} {
  func.func @_fused_kernel(%arg0: i32, %arg1: memref<16x128xf32, #tpu.memory_space<vmem>>, %arg2: memref<1x128xf32, #tpu.memory_space<vmem>>, %arg3: memref<1x128xf32, #tpu.memory_space<vmem>>, %arg4: memref<16x128xf32, #tpu.memory_space<vmem>>) attributes {dimension_semantics = [#tpu.dimension_semantics<arbitrary>], iteration_bounds = array<i64: 1>, scalar_prefetch = 0 : i64, scratch_operands = 0 : i64, tpu.core_type = #tpu.core_type<tc>, window_params = [{pipeline_mode = #tpu.pipeline_mode<synchronous>, transform_indices = @transform_0, window_bounds = array<i64: 16, 128>}, {pipeline_mode = #tpu.pipeline_mode<synchronous>, transform_indices = @transform_1, window_bounds = array<i64: 1, 128>}, {pipeline_mode = #tpu.pipeline_mode<synchronous>, transform_indices = @transform_2, window_bounds = array<i64: 1, 128>}, {pipeline_mode = #tpu.pipeline_mode<synchronous>, transform_indices = @transform_3, window_bounds = array<i64: 16, 128>}]} {
    %cst = arith.constant 0.000000e+00 : f32
    %0 = vector.broadcast %cst : f32 to vector<8x128xf32>
    %cst_0 = arith.constant 0.000000e+00 : f32
    %1 = vector.broadcast %cst_0 : f32 to vector<8x128xf32>
    %cst_1 = arith.constant dense<0.000000e+00> : vector<128xf32>
    %2 = vector.multi_reduction <add>, %0, %cst_1 [0] : vector<8x128xf32> to vector<128xf32>
    %3 = vector.shape_cast %2 : vector<128xf32> to vector<1x128xf32>
    %cst_2 = arith.constant dense<0.000000e+00> : vector<128xf32>
    %4 = vector.multi_reduction <add>, %1, %cst_2 [0] : vector<8x128xf32> to vector<128xf32>
    %5 = vector.shape_cast %4 : vector<128xf32> to vector<1x128xf32>
    %c0 = arith.constant 0 : index
    %c0_3 = arith.constant 0 : index
    %6 = vector.load %arg1[%c0, %c0_3] : memref<16x128xf32, #tpu.memory_space<vmem>>, vector<16x128xf32>
    %cst_4 = arith.constant dense<0.000000e+00> : vector<128xf32>
    %7 = vector.multi_reduction <add>, %6, %cst_4 [0] : vector<16x128xf32> to vector<128xf32>
    %8 = vector.shape_cast %7 : vector<128xf32> to vector<1x128xf32>
    %9 = arith.addf %3, %8 : vector<1x128xf32>
    %10 = arith.mulf %6, %6 : vector<16x128xf32>
    %cst_5 = arith.constant dense<0.000000e+00> : vector<128xf32>
    %11 = vector.multi_reduction <add>, %10, %cst_5 [0] : vector<16x128xf32> to vector<128xf32>
    %12 = vector.shape_cast %11 : vector<128xf32> to vector<1x128xf32>
    %13 = arith.addf %5, %12 : vector<1x128xf32>
    %c16_i32 = arith.constant 16 : i32
    %14 = tpu.dynamic_rotate %9 by %c16_i32 dim 1 : vector<1x128xf32>, i32 -> vector<1x128xf32>
    %15 = arith.addf %9, %14 : vector<1x128xf32>
    %c32_i32 = arith.constant 32 : i32
    %16 = tpu.dynamic_rotate %15 by %c32_i32 dim 1 : vector<1x128xf32>, i32 -> vector<1x128xf32>
    %17 = arith.addf %15, %16 : vector<1x128xf32>
    %c64_i32 = arith.constant 64 : i32
    %18 = tpu.dynamic_rotate %17 by %c64_i32 dim 1 : vector<1x128xf32>, i32 -> vector<1x128xf32>
    %19 = arith.addf %17, %18 : vector<1x128xf32>
    %c16_i32_6 = arith.constant 16 : i32
    %20 = tpu.dynamic_rotate %13 by %c16_i32_6 dim 1 : vector<1x128xf32>, i32 -> vector<1x128xf32>
    %21 = arith.addf %13, %20 : vector<1x128xf32>
    %c32_i32_7 = arith.constant 32 : i32
    %22 = tpu.dynamic_rotate %21 by %c32_i32_7 dim 1 : vector<1x128xf32>, i32 -> vector<1x128xf32>
    %23 = arith.addf %21, %22 : vector<1x128xf32>
    %c64_i32_8 = arith.constant 64 : i32
    %24 = tpu.dynamic_rotate %23 by %c64_i32_8 dim 1 : vector<1x128xf32>, i32 -> vector<1x128xf32>
    %25 = arith.addf %23, %24 : vector<1x128xf32>
    %cst_9 = arith.constant 7.812500e-03 : f32
    %26 = vector.broadcast %cst_9 : f32 to vector<1x128xf32>
    %27 = arith.mulf %19, %26 : vector<1x128xf32>
    %cst_10 = arith.constant 7.812500e-03 : f32
    %28 = vector.broadcast %cst_10 : f32 to vector<1x128xf32>
    %29 = arith.mulf %25, %28 : vector<1x128xf32>
    %30 = arith.mulf %27, %27 : vector<1x128xf32>
    %31 = arith.subf %29, %30 : vector<1x128xf32>
    %cst_11 = arith.constant 0.000000e+00 : f32
    %32 = vector.broadcast %cst_11 : f32 to vector<1x128xf32>
    %33 = arith.maximumf %31, %32 : vector<1x128xf32>
    %c0_12 = arith.constant 0 : index
    %c0_13 = arith.constant 0 : index
    %34 = vector.load %arg2[%c0_12, %c0_13] : memref<1x128xf32, #tpu.memory_space<vmem>>, vector<1x128xf32>
    %cst_14 = arith.constant 9.99999974E-6 : f32
    %35 = vector.broadcast %cst_14 : f32 to vector<1x128xf32>
    %36 = arith.addf %33, %35 : vector<1x128xf32>
    %37 = math.rsqrt %36 : vector<1x128xf32>
    %38 = arith.mulf %34, %37 : vector<1x128xf32>
    %c0_15 = arith.constant 0 : index
    %c0_16 = arith.constant 0 : index
    %39 = vector.load %arg3[%c0_15, %c0_16] : memref<1x128xf32, #tpu.memory_space<vmem>>, vector<1x128xf32>
    %40 = arith.mulf %27, %38 : vector<1x128xf32>
    %41 = arith.subf %39, %40 : vector<1x128xf32>
    %c0_17 = arith.constant 0 : index
    %c0_18 = arith.constant 0 : index
    %42 = vector.load %arg1[%c0_17, %c0_18] : memref<16x128xf32, #tpu.memory_space<vmem>>, vector<16x128xf32>
    %43 = vector.broadcast %38 : vector<1x128xf32> to vector<16x128xf32>
    %44 = arith.mulf %42, %43 : vector<16x128xf32>
    %45 = vector.broadcast %41 : vector<1x128xf32> to vector<16x128xf32>
    %46 = arith.addf %44, %45 : vector<16x128xf32>
    %c0_19 = arith.constant 0 : index
    %c0_20 = arith.constant 0 : index
    %47 = vector.load %arg4[%c0_19, %c0_20] : memref<16x128xf32, #tpu.memory_space<vmem>>, vector<16x128xf32>
    tpu.vector_store %arg4[%c0_19, %c0_20], %46 {strides = array<i32>} : memref<16x128xf32, #tpu.memory_space<vmem>>, vector<16x128xf32>,
    return
  }
  func.func @transform_0(%arg0: i32) -> (i32, i32) {
    %c0_i32 = arith.constant 0 : i32
    %c0_i32_0 = arith.constant 0 : i32
    %c0_i32_1 = arith.constant 0 : i32
    return %c0_i32, %c0_i32_0 : i32, i32
  }
  func.func @transform_1(%arg0: i32) -> (i32, i32) {
    %c0_i32 = arith.constant 0 : i32
    %c0_i32_0 = arith.constant 0 : i32
    %c0_i32_1 = arith.constant 0 : i32
    return %c0_i32, %c0_i32_0 : i32, i32
  }
  func.func @transform_2(%arg0: i32) -> (i32, i32) {
    %c0_i32 = arith.constant 0 : i32
    %c0_i32_0 = arith.constant 0 : i32
    %c0_i32_1 = arith.constant 0 : i32
    return %c0_i32, %c0_i32_0 : i32, i32
  }
  func.func @transform_3(%arg0: i32) -> (i32, i32) {
    %c0_i32 = arith.constant 0 : i32
    %c0_i32_0 = arith.constant 0 : i32
    %c0_i32_1 = arith.constant 0 : i32
    return %c0_i32, %c0_i32_0 : i32, i32
  }
}

</mosaic_0001>

<llo_original>
// kernel: tpu_custom_call.1
$region0: #{tpu_custom_call.1}
  #allocation0 [shape = 'u32[]', space=smem, size = 0x4, offset = 0x4, fixed_abs, tag = 'smem constant byte address 0x4 - core index']
  #allocation1 [shape = 'u32[72,128]{1,0:T(1,128)}', space=vmem, size = 0x9000, scoped, tag = 'internal scratch']
  %s0 = inlined_call_operand.hbm [shape: f32[16,128], index: 0, kind: input, shape index: {}]
  %s1 = inlined_call_operand.hbm [shape: f32[1,128], index: 1, kind: input, shape index: {}]
  %s2 = inlined_call_operand.vmem [shape: f32[1,128], index: 2, kind: input, shape index: {}]
  %s3 = inlined_call_operand.hbm [shape: f32[16,128], index: 3, kind: output, shape index: {}]
  %s4 = sld [smem:[#allocation0]]
  $region30: #{tpu_custom_call.1} parent=0
    _
  %s6 = ssub.s32 1, %s4
  %s7 = scalar_select 0, %s6, %s4
  $region1: #{tpu_custom_call.1} parent=0
    #allocation2 [shape = 'u8[8192]{0}', space=vmem, size = 0x2000, scoped, tag = 'input window, operand 0, single buffered']
    #allocation3 [shape = 's32[1]{0}', space=sflag, size = 0x4, scoped, tag = 'scoped memory for tpu_custom_call.1']
    #allocation4 [shape = 's32[1]{0}', space=sflag, size = 0x4, scoped, tag = 'scoped memory for tpu_custom_call.1']
    #allocation5 [shape = 'u8[512]{0}', space=vmem, size = 0x400, scoped, tag = 'input window, operand 1, single buffered']
    #allocation6 [shape = 's32[1]{0}', space=sflag, size = 0x4, scoped, tag = 'scoped memory for tpu_custom_call.1']
    #allocation7 [shape = 'u8[8192]{0}', space=vmem, size = 0x2000, scoped, tag = 'output window, operand 0, single buffered']
    %8 = vsyncpa [#allocation3], 0
    %9 = vsyncpa [#allocation6], 0
    %10 = vsyncpa [#allocation4], 0
    // Predicated region
    $region2: #{tpu_custom_call.1} parent=1 // pred_check
      _
    $region3: #{tpu_custom_call.1} parent=1 // pred_check_branch
      %12 = sbr.rel (0) target = $region5
    $region4: #{tpu_custom_call.1} parent=1 // pred_region
      %14 = vsyncadd [#allocation3], 0
      %s15 = sshll.u32 %s0, 4
      %s16 = int_to_ptr.hbm [resolvable:$true] %s15
      %s17 = sshll.u32 [#allocation2], 4
      %s18 = int_to_ptr.vmem [resolvable:$true] %s17
      %23 = dma.hbm_to_vmem [thread:$0]  %s16, 256, %s18, [#allocation3], 128, 128, 8
    $region5: #{tpu_custom_call.1} parent=1 // pred_fallthru
      _
    // Predicated region
    $region6: #{tpu_custom_call.1} parent=1 // pred_check
      _
    $region7: #{tpu_custom_call.1} parent=1 // pred_check_branch
      %25 = sbr.rel (0) target = $region9
    $region8: #{tpu_custom_call.1} parent=1 // pred_region
      %27 = vsyncadd [#allocation6], 0
      %s29 = sshll.u32 %s1, 4
      %s30 = int_to_ptr.hbm [resolvable:$true] %s29
      %s31 = sshll.u32 [#allocation5], 4
      %s32 = int_to_ptr.vmem [resolvable:$true] %s31
      %34 = dma.hbm_to_vmem [thread:$0]  %s30, 16, %s32, [#allocation6]
    $region9: #{tpu_custom_call.1} parent=1 // pred_fallthru
      _
    // Predicated region
    $region10: #{tpu_custom_call.1} parent=1 // pred_check
      _
    $region11: #{tpu_custom_call.1} parent=1 // pred_check_branch
      %36 = sbr.rel (0) target = $region13
    $region12: #{tpu_custom_call.1} parent=1 // pred_region
      _
    $region13: #{tpu_custom_call.1} parent=1 // pred_fallthru
      _
    // Predicated region
    $region14: #{tpu_custom_call.1} parent=1 // pred_check
      _
    $region15: #{tpu_custom_call.1} parent=1 // pred_check_branch
      %38 = sbr.rel (0) target = $region17
    $region16: #{tpu_custom_call.1} parent=1 // pred_region
      %40 = dma.done [#allocation3], 256
    $region17: #{tpu_custom_call.1} parent=1 // pred_fallthru
      _
    // Predicated region
    $region18: #{tpu_custom_call.1} parent=1 // pred_check
      _
    $region19: #{tpu_custom_call.1} parent=1 // pred_check_branch
      %42 = sbr.rel (0) target = $region21
    $region20: #{tpu_custom_call.1} parent=1 // pred_region
      %44 = dma.done [#allocation6], 16
    $region21: #{tpu_custom_call.1} parent=1 // pred_fallthru
      _
    %v45 = vld [vmem:[#allocation2] sm:$0xff]
    %v46 = vld [vmem:[#allocation2 + $0x8] sm:$0xff]
    %v47 = vadd.f32 %v45, %v46
    %v48 = vrot.slane %v47, 4
    %v49 = vadd.f32 %v47, %v48
    %v50 = vrot.slane %v49, 2
    %v51 = vadd.f32 %v49, %v50
    %v52 = vrot.slane %v51, 1
    %v53 = vadd.f32 %v51, %v52
    %v54 = vadd.f32 0.0, %v53
    %v55 = vmul.f32 %v45, %v45
    %v56 = vmul.f32 %v46, %v46
    %v57 = vadd.f32 %v55, %v56
    %v58 = vrot.slane %v57, 4
    %v59 = vadd.f32 %v57, %v58
    %v60 = vrot.slane %v59, 2
    %v61 = vadd.f32 %v59, %v60
    %v62 = vrot.slane %v61, 1
    %v63 = vadd.f32 %v61, %v62
    %v64 = vadd.f32 0.0, %v63
    %65 = vrot.lane.b32.xlu0 %v54, 16
    %v66 = vpop.permute.xlu0 %65
    %v67 = vadd.f32 %v54, %v66
    %68 = vrot.lane.b32.xlu0 %v67, 32
    %v69 = vpop.permute.xlu0 %68
    %v70 = vadd.f32 %v67, %v69
    %71 = vrot.lane.b32.xlu0 %v70, 64
    %v72 = vpop.permute.xlu0 %71
    %v73 = vadd.f32 %v70, %v72
    %74 = vrot.lane.b32.xlu0 %v64, 16
    %v75 = vpop.permute.xlu0 %74
    %v76 = vadd.f32 %v64, %v75
    %77 = vrot.lane.b32.xlu0 %v76, 32
    %v78 = vpop.permute.xlu0 %77
    %v79 = vadd.f32 %v76, %v78
    %80 = vrot.lane.b32.xlu0 %v79, 64
    %v81 = vpop.permute.xlu0 %80
    %v82 = vadd.f32 %v79, %v81
    %v83 = vmul.f32 %v73, 0.0078125
    %v84 = vmul.f32 %v82, 0.0078125
    %v85 = vmul.f32 %v83, %v83
    %v86 = vsub.f32 %v84, %v85
    %v87 = vmax.f32 %v86, 0.0
    %v88 = vld [vmem:[#allocation5] sm:$0x1]
    %v89 = vadd.f32 %v87, 1e-05
    %v90 = vrsqrt.pop %v89
    %v91 = vmul.f32 %v90, %v89
    %v92 = vmul.f32 %v91, %v90
    %v93 = vmul.f32 0.5, %v92
    %v94 = vsub.f32 1.5, %v93
    %v95 = vmul.f32 %v90, %v94
    %vm96 = vweird.f32 %v89
    %vm97 = vweird.f32 %v90
    %vm98 = vmor %vm96, %vm97
    %v99 = vsel %vm98, %v90, %v95
    %v100 = vmul.f32 %v88, %v99
    %v101 = vld [vmem:[%s2] sm:$0x1]
    %v102 = vmul.f32 %v83, %v100
    %v103 = vsub.f32 %v101, %v102
    %v105 = vperm.slane %v100, 0
    %v107 = vmul.f32 %v45, %v105
    %v108 = vmul.f32 %v46, %v105
    %v110 = vperm.slane %v103, 0
    %v112 = vadd.f32 %v107, %v110
    %v113 = vadd.f32 %v108, %v110
    %114 = vst [vmem:[#allocation7] sm:$0xff] %v112
    %115 = vst [vmem:[#allocation7 + $0x8] sm:$0xff] %v113
    // Predicated region
    $region22: #{tpu_custom_call.1} parent=1 // pred_check
      _
    $region23: #{tpu_custom_call.1} parent=1 // pred_check_branch
      %117 = sbr.rel (0) target = $region25
    $region24: #{tpu_custom_call.1} parent=1 // pred_region
      %119 = vsyncadd [#allocation4], 0
      %s120 = sshll.u32 [#allocation7], 4
      %s121 = int_to_ptr.vmem [resolvable:$true] %s120
      %s122 = sshll.u32 %s3, 4
      %s123 = int_to_ptr.hbm [resolvable:$true] %s122
      %128 = dma.vmem_to_hbm [thread:$0]  %s121, 256, %s123, [#allocation4], 128, 128, 8
    $region25: #{tpu_custom_call.1} parent=1 // pred_fallthru
      _
    // Predicated region
    $region26: #{tpu_custom_call.1} parent=1 // pred_check
      _
    $region27: #{tpu_custom_call.1} parent=1 // pred_check_branch
      %130 = sbr.rel (0) target = $region29
    $region28: #{tpu_custom_call.1} parent=1 // pred_region
      %132 = dma.done [#allocation4], 256
    $region29: #{tpu_custom_call.1} parent=1 // pred_fallthru
      _
    %133 = vsyncpa [#allocation3], 1
    %134 = vsyncpa [#allocation6], 1
    %135 = vsyncpa [#allocation4], 1

</llo_original>
